<compile_context>
chip_gen: v7x
topology: tpu7x:2x2x1
jax: 0.10.0
libtpu: 0.0.40
codegen_flags: <defaults>
</compile_context>

<pallas_src>
import jax
import jax.numpy as jnp
from jax.experimental import pallas as pl
from jax.experimental.pallas import tpu as pltpu


def _mask_apply_kernel(mask_ref, x_ref, o_ref):
    """o = where(column_mask, 0, x) on one (TILE_R, TILE_C) tile.

    mask_ref : VMEM f32[1, TILE_C]       (1.0 on columns to be zeroed)
    x_ref    : VMEM    [TILE_R, TILE_C]
    o_ref    : VMEM    [TILE_R, TILE_C]
    """
    inside = mask_ref[...] != 0.0                   # [1, TILE_C] bool
    # Broadcast over the sublane (row) axis; scalar 0 avoids a full-vreg zero.
    o_ref[...] = jnp.where(inside, 0.0, x_ref[...])


def _pick_tiles(rows, cols, itemsize, x_block_budget_bytes=2 * 1024 * 1024):
    """Choose block dims respecting the (8,128) rule and a VMEM budget."""
    # Row (sublane) tile: full extent when small, else a multiple of 8.
    tile_r = rows if rows <= 512 else 512
    # Column (lane) tile: multiple of 128, or full extent if cols isn't.
    if cols % 128 != 0:
        tile_c = cols
    else:
        tc = (x_block_budget_bytes // max(1, tile_r * itemsize)) // 128 * 128
        tile_c = min(cols, max(128, tc))
    return int(tile_r), int(tile_c)


def deterministic_time_masking(x, seed=0, time_mask_param=8, mask_value=0.0):
    """Deterministic wrapper around TimeMasking; hot path in Pallas.

    x : [batch, channel, freq, time]
    """
    assert mask_value == 0.0  # TimeMasking default (TODO: plumb through params)
    b, c, f, t = x.shape

    # --- deterministic "random" mask parameters from the seed (glue) --------
    key = jax.random.PRNGKey(seed)
    k_val, k_min = jax.random.split(key)
    value = jax.random.uniform(k_val) * time_mask_param           # [0, param)
    min_value = jax.random.uniform(k_min) * (t - value)           # [0, t-value)
    mask_start = jnp.int32(jnp.floor(min_value))
    mask_len = jnp.int32(jnp.floor(value))

    # --- tiny O(F*T) column mask over the flattened (F*T) lane axis ---------
    t_idx = jnp.arange(t, dtype=jnp.int32)
    inside_t = (t_idx >= mask_start) & (t_idx < mask_start + mask_len)  # [T]
    # Column index in the [B*C, F*T] view is fi*T + ti, so tile over F.
    col_mask = jnp.tile(inside_t, f).astype(jnp.float32)[None, :]       # [1, F*T]

    # --- Pallas kernel: tiled, lane-dense elementwise masking ---------------
    rows = b * c
    cols = f * t
    x2d = x.reshape(rows, cols)                      # free reshape (contiguous)

    tile_r, tile_c = _pick_tiles(rows, cols, jnp.dtype(x.dtype).itemsize)
    grid = (pl.cdiv(rows, tile_r), pl.cdiv(cols, tile_c))

    out2d = pl.pallas_call(
        _mask_apply_kernel,
        out_shape=jax.ShapeDtypeStruct((rows, cols), x.dtype),
        grid=grid,
        in_specs=[
            pl.BlockSpec((1, tile_c), lambda i, j: (0, j)),        # column mask
            pl.BlockSpec((tile_r, tile_c), lambda i, j: (i, j)),   # input tile
        ],
        out_specs=pl.BlockSpec((tile_r, tile_c), lambda i, j: (i, j)),
        compiler_params=pltpu.CompilerParams(
            dimension_semantics=("parallel", "parallel"),
            vmem_limit_bytes=32 * 1024 * 1024,
        ),
    )(col_mask, x2d)

    return out2d.reshape(b, c, f, t)


if __name__ == "__main__":
    key = jax.random.PRNGKey(0)
    # Small spectrogram-like input: batch=2, channel=4, freq=16, time=16.
    x = jax.random.normal(key, (2, 4, 16, 16), dtype=jnp.float32)

    out = deterministic_time_masking(x, seed=0, time_mask_param=8)
    out = jax.block_until_ready(out)

    # Sanity checks: determinism + correct masking semantics.
    out2 = jax.block_until_ready(
        deterministic_time_masking(x, seed=0, time_mask_param=8))
    assert jnp.array_equal(out, out2), "wrapper must be deterministic"
    assert out.shape == x.shape and out.dtype == x.dtype

    # Verify against a pure-JAX reference of the same deterministic transform.
    k_val, k_min = jax.random.split(jax.random.PRNGKey(0))
    value = jax.random.uniform(k_val) * 8
    min_value = jax.random.uniform(k_min) * (x.shape[-1] - value)
    s = int(jnp.floor(min_value))
    l = int(jnp.floor(value))
    t_idx = jnp.arange(x.shape[-1])
    ref = jnp.where((t_idx >= s) & (t_idx < s + l), 0.0, x)
    assert jnp.allclose(out, ref), "kernel mismatch vs reference"

    print("KERNEL_OK")
</pallas_src>

<mosaic_0001>
module attributes {stable_mosaic.version = 11 : i64} {
  func.func @_mask_apply_kernel(%arg0: i32, %arg1: i32, %arg2: memref<1x256xf32, #tpu.memory_space<vmem>>, %arg3: memref<8x256xf32, #tpu.memory_space<vmem>>, %arg4: memref<8x256xf32, #tpu.memory_space<vmem>>) attributes {dimension_semantics = [#tpu.dimension_semantics<parallel>, #tpu.dimension_semantics<parallel>], iteration_bounds = array<i64: 1, 1>, scalar_prefetch = 0 : i64, scratch_operands = 0 : i64, tpu.core_type = #tpu.core_type<tc>, window_params = [{transform_indices = @transform_0, window_bounds = array<i64: 1, 256>}, {transform_indices = @transform_1, window_bounds = array<i64: 8, 256>}, {transform_indices = @transform_2, window_bounds = array<i64: 8, 256>}]} {
    %c0 = arith.constant 0 : index
    %c0_0 = arith.constant 0 : index
    %0 = vector.load %arg2[%c0, %c0_0] : memref<1x256xf32, #tpu.memory_space<vmem>>, vector<1x256xf32>
    %cst = arith.constant 0.000000e+00 : f32
    %1 = vector.broadcast %cst : f32 to vector<1x256xf32>
    %2 = arith.cmpf one, %0, %1 : vector<1x256xf32>
    %c0_1 = arith.constant 0 : index
    %c0_2 = arith.constant 0 : index
    %3 = vector.load %arg3[%c0_1, %c0_2] : memref<8x256xf32, #tpu.memory_space<vmem>>, vector<8x256xf32>
    %cst_3 = arith.constant 0.000000e+00 : f32
    %4 = vector.shape_cast %2 : vector<1x256xi1> to vector<1x256xi1>
    %5 = vector.broadcast %4 : vector<1x256xi1> to vector<8x256xi1>
    %6 = vector.broadcast %cst_3 : f32 to vector<8x256xf32>
    %7 = arith.select %5, %6, %3 : vector<8x256xi1>, vector<8x256xf32>
    %c0_4 = arith.constant 0 : index
    %c0_5 = arith.constant 0 : index
    %8 = vector.load %arg4[%c0_4, %c0_5] : memref<8x256xf32, #tpu.memory_space<vmem>>, vector<8x256xf32>
    tpu.vector_store %arg4[%c0_4, %c0_5], %7 {strides = array<i32>} : memref<8x256xf32, #tpu.memory_space<vmem>>, vector<8x256xf32>,
    return
  }
  func.func @transform_0(%arg0: i32, %arg1: i32) -> (i32, i32) {
    %c0_i32 = arith.constant 0 : i32
    %c0_i32_0 = arith.constant 0 : i32
    return %c0_i32, %arg1 : i32, i32
  }
  func.func @transform_1(%arg0: i32, %arg1: i32) -> (i32, i32) {
    %c0_i32 = arith.constant 0 : i32
    return %arg0, %arg1 : i32, i32
  }
  func.func @transform_2(%arg0: i32, %arg1: i32) -> (i32, i32) {
    %c0_i32 = arith.constant 0 : i32
    return %arg0, %arg1 : i32, i32
  }
}

</mosaic_0001>

<llo_original>
// kernel: tpu_custom_call.1
$region0: #{tpu_custom_call.1}
  #allocation0 [shape = 'u32[]', space=smem, size = 0x4, offset = 0x4, fixed_abs, tag = 'smem constant byte address 0x4 - core index']
  #allocation1 [shape = 'u32[144,128]{1,0:T(1,128)}', space=vmem, size = 0x12000, scoped, tag = 'internal scratch']
  %s0 = inlined_call_operand.hbm [shape: f32[1,256], index: 0, kind: input, shape index: {}]
  %s1 = inlined_call_operand.hbm [shape: f32[8,256], index: 1, kind: input, shape index: {}]
  %s2 = inlined_call_operand.hbm [shape: f32[8,256], index: 2, kind: output, shape index: {}]
  %s3 = sld [smem:[#allocation0]]
  $region26: #{tpu_custom_call.1} parent=0
    _
  %s5 = ssub.s32 1, %s3
  %s6 = scalar_select 0, %s5, %s3
  $region1: #{tpu_custom_call.1} parent=0
    #allocation2 [shape = 'u8[1024]{0}', space=vmem, size = 0x400, scoped, tag = 'input window, operand 0, single buffered']
    #allocation3 [shape = 's32[1]{0}', space=sflag, size = 0x4, scoped, tag = 'scoped memory for tpu_custom_call.1']
    #allocation4 [shape = 's32[1]{0}', space=sflag, size = 0x4, scoped, tag = 'scoped memory for tpu_custom_call.1']
    #allocation5 [shape = 'u8[8192]{0}', space=vmem, size = 0x2000, scoped, tag = 'input window, operand 1, single buffered']
    #allocation6 [shape = 's32[1]{0}', space=sflag, size = 0x4, scoped, tag = 'scoped memory for tpu_custom_call.1']
    #allocation7 [shape = 'u8[8192]{0}', space=vmem, size = 0x2000, scoped, tag = 'output window, operand 0, single buffered']
    %7 = vsyncpa [#allocation3], 0
    %8 = vsyncpa [#allocation6], 0
    %9 = vsyncpa [#allocation4], 0
    // Predicated region
    $region2: #{tpu_custom_call.1} parent=1 // pred_check
      _
    $region3: #{tpu_custom_call.1} parent=1 // pred_check_branch
      %11 = sbr.rel (0) target = $region5
    $region4: #{tpu_custom_call.1} parent=1 // pred_region
      %s13 = ssub.s32 32, 32
      %14 = vsyncadd [#allocation3], %s13
      %s16 = sshll.u32 [#allocation2], 4
      %s17 = int_to_ptr.vmem [resolvable:$true] %s16
      %19 = dma.hbm_to_vmem [thread:$0]  %s0, 32, %s17, [#allocation3]
    $region5: #{tpu_custom_call.1} parent=1 // pred_fallthru
      _
    // Predicated region
    $region6: #{tpu_custom_call.1} parent=1 // pred_check
      _
    $region7: #{tpu_custom_call.1} parent=1 // pred_check_branch
      %21 = sbr.rel (0) target = $region9
    $region8: #{tpu_custom_call.1} parent=1 // pred_region
      %s23 = ssub.s32 256, 256
      %24 = vsyncadd [#allocation6], %s23
      %s26 = sshll.u32 [#allocation5], 4
      %s27 = int_to_ptr.vmem [resolvable:$true] %s26
      %29 = dma.hbm_to_vmem [thread:$0]  %s1, 256, %s27, [#allocation6]
    $region9: #{tpu_custom_call.1} parent=1 // pred_fallthru
      _
    // Predicated region
    $region10: #{tpu_custom_call.1} parent=1 // pred_check
      _
    $region11: #{tpu_custom_call.1} parent=1 // pred_check_branch
      %31 = sbr.rel (0) target = $region13
    $region12: #{tpu_custom_call.1} parent=1 // pred_region
      %32 = dma.done [#allocation3], 32
    $region13: #{tpu_custom_call.1} parent=1 // pred_fallthru
      _
    // Predicated region
    $region14: #{tpu_custom_call.1} parent=1 // pred_check
      _
    $region15: #{tpu_custom_call.1} parent=1 // pred_check_branch
      %34 = sbr.rel (0) target = $region17
    $region16: #{tpu_custom_call.1} parent=1 // pred_region
      %35 = dma.done [#allocation6], 256
    $region17: #{tpu_custom_call.1} parent=1 // pred_fallthru
      _
    %v36 = vld [vmem:[#allocation2] sm:$0x3]
    %vm37 = vcmp.ne.f32.partialorder %v36, 0.0
    %v38 = vld [vmem:[#allocation5] sm:$0xff]
    %v39 = vld [vmem:[#allocation5 + $0x8] sm:$0xff]
    %v40 = vsel %vm37, 1, 0
    %v41 = vlaneseq
    %v42 = vshrl.u32 %v41, 7
    %v43 = vsub.s32 0, %v42
    %v44 = vrot.slane %v40, %v43
    %v45 = vlaneseq
    %v46 = vshrl.u32 %v45, 7
    %v47 = vsub.s32 1, %v46
    %v48 = vrot.slane %v40, %v47
    %vm49 = vcmp.eq.s32.totalorder %v44, 1
    %vm50 = vcmp.eq.s32.totalorder %v48, 1
    %v51 = vsel %vm49, 0.0, %v38
    %v52 = vsel %vm50, 0.0, %v39
    %53 = vst [vmem:[#allocation7] sm:$0xff] %v51
    %54 = vst [vmem:[#allocation7 + $0x8] sm:$0xff] %v52
    // Predicated region
    $region18: #{tpu_custom_call.1} parent=1 // pred_check
      _
    $region19: #{tpu_custom_call.1} parent=1 // pred_check_branch
      %56 = sbr.rel (0) target = $region21
    $region20: #{tpu_custom_call.1} parent=1 // pred_region
      %s58 = ssub.s32 256, 256
      %59 = vsyncadd [#allocation4], %s58
      %s61 = sshll.u32 [#allocation7], 4
      %s62 = int_to_ptr.vmem [resolvable:$true] %s61
      %64 = dma.vmem_to_hbm [thread:$0]  %s62, 256, %s2, [#allocation4]
    $region21: #{tpu_custom_call.1} parent=1 // pred_fallthru
      _
    // Predicated region
    $region22: #{tpu_custom_call.1} parent=1 // pred_check
      _
    $region23: #{tpu_custom_call.1} parent=1 // pred_check_branch
      %66 = sbr.rel (0) target = $region25
    $region24: #{tpu_custom_call.1} parent=1 // pred_region
      %67 = dma.done [#allocation4], 256
    $region25: #{tpu_custom_call.1} parent=1 // pred_fallthru
      _
    %68 = vsyncpa [#allocation3], 1
    %69 = vsyncpa [#allocation6], 1
    %70 = vsyncpa [#allocation4], 1

</llo_original>
